<compile_context>
chip_gen: v5e
topology: v5e:2x2
jax: 0.10.0
libtpu: 0.0.40
codegen_flags: <defaults>
</compile_context>

<pallas_src>
import functools

import jax
import jax.numpy as jnp
from jax import lax
from jax.experimental import pallas as pl
from jax.experimental.pallas import tpu as pltpu


def _lstm_tracker_kernel(x_ref, wih_ref, whh_ref, b_ref, wh_ref, bh_ref,
                         out_ref, gx_ref, *, hidden_dim):
    """LSTM unroll + fused linear head for one batch block."""
    T, Bb, _ = x_ref.shape
    H = hidden_dim
    G = 4 * H                     # 4H == one 128-lane vreg width when H == 32

    wih = wih_ref[...]            # (D, 4H)
    whh = whh_ref[...]            # (4H, 4H), rows >= H are zero
    b = b_ref[...]                # (1, 4H)  == b_ih + b_hh

    # ---- Hoisted input projection (independent of the recurrence; bias folded in).
    for t in range(T):            # T is static; these matmuls are off the serial path
        gx_ref[t] = jnp.dot(x_ref[t], wih,
                            preferred_element_type=jnp.float32) + b

    # Lane mask selecting the 'g' gate block (lanes [2H, 3H)).  Hoisted out of the loop.
    lanes = lax.broadcasted_iota(jnp.int32, (Bb, G), dimension=1)
    g_mask = (lanes >= 2 * H) & (lanes < 3 * H)

    # h / c carried 128-lanes wide; only lanes [0, H) are meaningful.
    h0 = jnp.zeros((Bb, G), jnp.float32)
    c0 = jnp.zeros((Bb, G), jnp.float32)

    def step(t, carry):
        h, c = carry
        gates = gx_ref[t] + jnp.dot(h, whh, preferred_element_type=jnp.float32)
        sg = jax.nn.sigmoid(gates)            # whole-vreg EUP pass
        tg = jnp.tanh(gates)                  # whole-vreg EUP pass
        act = jnp.where(g_mask, tg, sg)       # lanes: [ i | f | g | o ]
        f_al = pltpu.roll(act, 3 * H, 1)      # lanes [0,H) now hold f
        g_al = pltpu.roll(act, 2 * H, 1)      # lanes [0,H) now hold g
        o_al = pltpu.roll(act, H, 1)          # lanes [0,H) now hold o
        c_new = f_al * c + act * g_al         # valid in lanes [0,H); junk elsewhere
        h_new = o_al * jnp.tanh(c_new)        # whole-vreg EUP pass
        return h_new, c_new

    # Fully unrolled: T is static, lets the scheduler interleave step t+1 loads
    # under the EUP/VPU tail of step t.
    h_T, _ = lax.fori_loop(0, T, step, (h0, c0), unroll=True)

    # Fused feature->output head (exact fusion, weights padded to 4H rows so the
    # junk lanes of h_T contribute nothing).
    out = jnp.dot(h_T, wh_ref[...], preferred_element_type=jnp.float32) + bh_ref[...]
    out_ref[...] = out.astype(out_ref.dtype)


def rnn_tracker_forward(isequence, params):
    """isequence: (batch, num_frames, input_dim) float32, like the PyTorch forward."""
    B, T, D = isequence.shape
    H = params["w_hh"].shape[1]
    G = 4 * H

    # Time-major, as in `isequence.permute(1, 0, 2)`.
    x_tm = jnp.transpose(isequence, (1, 0, 2)).astype(jnp.float32)   # (T, B, D)

    # Pre-transpose weights to (in, out); fold the two LSTM biases together.
    wih_t = params["w_ih"].T.astype(jnp.float32)                     # (D, 4H)
    whh_t = params["w_hh"].T.astype(jnp.float32)                     # (H, 4H)
    whh_pad = jnp.zeros((G, G), jnp.float32).at[:H, :].set(whh_t)    # (4H, 4H)
    b = (params["b_ih"] + params["b_hh"]).reshape(1, G).astype(jnp.float32)

    # Exact algebraic fusion of the two heads (no nonlinearity in between).
    w_head = (params["w_feat"].T @ params["w_out"].T).astype(jnp.float32)   # (H, 2)
    b_head = (params["b_feat"] @ params["w_out"].T
              + params["b_out"]).reshape(1, 2).astype(jnp.float32)          # (1, 2)
    w_head_pad = jnp.zeros((G, 2), jnp.float32).at[:H, :].set(w_head)       # (4H, 2)

    # Batch-parallel grid: blocks of 128 rows for large batches (megacore on v7x),
    # otherwise a single block containing the whole (small) batch.
    bb = 128 if (B > 128 and B % 128 == 0) else B
    grid = (B // bb,)

    def replicated(arr):
        zeros = (0,) * arr.ndim
        return pl.BlockSpec(arr.shape, lambda i: zeros)

    kernel = functools.partial(_lstm_tracker_kernel, hidden_dim=H)

    return pl.pallas_call(
        kernel,
        out_shape=jax.ShapeDtypeStruct((B, 2), jnp.float32),
        grid_spec=pltpu.PrefetchScalarGridSpec(
            num_scalar_prefetch=0,
            grid=grid,
            in_specs=[
                pl.BlockSpec((T, bb, D), lambda i: (0, i, 0)),   # x, blocked over batch
                replicated(wih_t),
                replicated(whh_pad),
                replicated(b),
                replicated(w_head_pad),
                replicated(b_head),
            ],
            out_specs=pl.BlockSpec((bb, 2), lambda i: (i, 0)),
            scratch_shapes=[pltpu.VMEM((T, bb, G), jnp.float32)],   # hoisted gates_x
        ),
        compiler_params=pltpu.CompilerParams(
            dimension_semantics=("parallel",)),
    )(x_tm, wih_t, whh_pad, b, w_head_pad, b_head)


def rnn_tracker_reference(isequence, params):
    """Pure-JAX reference of the same forward, for a sanity check."""
    B, T, D = isequence.shape
    H = params["w_hh"].shape[1]
    x_tm = jnp.transpose(isequence, (1, 0, 2))
    h = jnp.zeros((B, H), jnp.float32)
    c = jnp.zeros((B, H), jnp.float32)
    for t in range(T):
        gates = (x_tm[t] @ params["w_ih"].T + params["b_ih"]
                 + h @ params["w_hh"].T + params["b_hh"])
        i_g, f_g, g_g, o_g = jnp.split(gates, 4, axis=1)
        i_g, f_g, o_g = jax.nn.sigmoid(i_g), jax.nn.sigmoid(f_g), jax.nn.sigmoid(o_g)
        g_g = jnp.tanh(g_g)
        c = f_g * c + i_g * g_g
        h = o_g * jnp.tanh(c)
    feats = h @ params["w_feat"].T + params["b_feat"]
    return feats @ params["w_out"].T + params["b_out"]


def init_params(key, input_dim, hidden_dim, feature_dim):
    """Deterministic synthetic parameters mirroring the module's shapes."""
    ks = jax.random.split(key, 8)
    s = 1.0 / jnp.sqrt(hidden_dim)
    u = lambda k, shape, scale: jax.random.uniform(k, shape, jnp.float32, -scale, scale)
    return {
        # nn.LSTMCell(input_dim, hidden_dim)
        "w_ih": u(ks[0], (4 * hidden_dim, input_dim), s),
        "w_hh": u(ks[1], (4 * hidden_dim, hidden_dim), s),
        "b_ih": u(ks[2], (4 * hidden_dim,), s),
        "b_hh": u(ks[3], (4 * hidden_dim,), s),
        # nn.Linear(hidden_dim, feature_dim)
        "w_feat": u(ks[4], (feature_dim, hidden_dim), 1.0 / jnp.sqrt(hidden_dim)),
        "b_feat": u(ks[5], (feature_dim,), 1.0 / jnp.sqrt(hidden_dim)),
        # nn.Linear(feature_dim, 2)
        "w_out": u(ks[6], (2, feature_dim), 1.0 / jnp.sqrt(feature_dim)),
        "b_out": u(ks[7], (2,), 1.0 / jnp.sqrt(feature_dim)),
    }


if __name__ == "__main__":
    batch, num_frames = 2, 8
    input_dim, hidden_dim, feature_dim = 16, 32, 16

    key = jax.random.PRNGKey(0)
    k_x, k_p = jax.random.split(key)
    isequence = jax.random.normal(k_x, (batch, num_frames, input_dim), jnp.float32)
    params = init_params(k_p, input_dim, hidden_dim, feature_dim)

    out = rnn_tracker_forward(isequence, params)
    out = jax.block_until_ready(out)

    ref = rnn_tracker_reference(isequence, params)
    assert out.shape == (batch, 2)
    assert jnp.allclose(out, ref, atol=1e-2, rtol=1e-2), (out, ref)

    print("KERNEL_OK")
</pallas_src>

<mosaic_0001>
module attributes {stable_mosaic.version = 11 : i64} {
  func.func @_lstm_tracker_kernel(%arg0: i32, %arg1: memref<8x2x16xf32, #tpu.memory_space<vmem>>, %arg2: memref<16x128xf32, #tpu.memory_space<vmem>>, %arg3: memref<128x128xf32, #tpu.memory_space<vmem>>, %arg4: memref<1x128xf32, #tpu.memory_space<vmem>>, %arg5: memref<128x2xf32, #tpu.memory_space<vmem>>, %arg6: memref<1x2xf32, #tpu.memory_space<vmem>>, %arg7: memref<2x2xf32, #tpu.memory_space<vmem>>, %arg8: memref<8x2x128xf32, #tpu.memory_space<vmem>>) attributes {dimension_semantics = [#tpu.dimension_semantics<parallel>], iteration_bounds = array<i64: 1>, scalar_prefetch = 0 : i64, scratch_operands = 1 : i64, tpu.core_type = #tpu.core_type<tc>, window_params = [{transform_indices = @transform_0, window_bounds = array<i64: 8, 2, 16>}, {pipeline_mode = #tpu.pipeline_mode<synchronous>, transform_indices = @transform_1, window_bounds = array<i64: 16, 128>}, {pipeline_mode = #tpu.pipeline_mode<synchronous>, transform_indices = @transform_2, window_bounds = array<i64: 128, 128>}, {pipeline_mode = #tpu.pipeline_mode<synchronous>, transform_indices = @transform_3, window_bounds = array<i64: 1, 128>}, {pipeline_mode = #tpu.pipeline_mode<synchronous>, transform_indices = @transform_4, window_bounds = array<i64: 128, 2>}, {pipeline_mode = #tpu.pipeline_mode<synchronous>, transform_indices = @transform_5, window_bounds = array<i64: 1, 2>}, {transform_indices = @transform_6, window_bounds = array<i64: 2, 2>}]} {
    %c0 = arith.constant 0 : index
    %c0_0 = arith.constant 0 : index
    %0 = vector.load %arg2[%c0, %c0_0] : memref<16x128xf32, #tpu.memory_space<vmem>>, vector<16x128xf32>
    %c0_1 = arith.constant 0 : index
    %c0_2 = arith.constant 0 : index
    %1 = vector.load %arg3[%c0_1, %c0_2] : memref<128x128xf32, #tpu.memory_space<vmem>>, vector<128x128xf32>
    %c0_3 = arith.constant 0 : index
    %c0_4 = arith.constant 0 : index
    %2 = vector.load %arg4[%c0_3, %c0_4] : memref<1x128xf32, #tpu.memory_space<vmem>>, vector<1x128xf32>
    %c0_5 = arith.constant 0 : index
    %c0_6 = arith.constant 0 : index
    %c0_7 = arith.constant 0 : index
    %3 = vector.load %arg1[%c0_5, %c0_6, %c0_7] : memref<8x2x16xf32, #tpu.memory_space<vmem>>, vector<1x2x16xf32>
    %4 = vector.shape_cast %3 : vector<1x2x16xf32> to vector<2x16xf32>
    %cst = arith.constant dense<0.000000e+00> : vector<2x128xf32>
    %5 = tpu.matmul %4, %0, %cst {dimension_numbers = #tpu.dot_dimension_numbers<[1], [0], [0], [1], [0, 0, 1, 1], [], []>} : vector<2x16xf32>, vector<16x128xf32>, vector<2x128xf32> -> vector<2x128xf32>
    %6 = vector.broadcast %2 : vector<1x128xf32> to vector<2x128xf32>
    %7 = arith.addf %5, %6 : vector<2x128xf32>
    %c0_8 = arith.constant 0 : index
    %c0_9 = arith.constant 0 : index
    %c0_10 = arith.constant 0 : index
    %8 = vector.load %arg8[%c0_8, %c0_9, %c0_10] : memref<8x2x128xf32, #tpu.memory_space<vmem>>, vector<1x2x128xf32>
    %9 = vector.shape_cast %8 : vector<1x2x128xf32> to vector<2x128xf32>
    %10 = vector.shape_cast %7 : vector<2x128xf32> to vector<1x2x128xf32>
    tpu.vector_store %arg8[%c0_8, %c0_9, %c0_10], %10 {strides = array<i32>} : memref<8x2x128xf32, #tpu.memory_space<vmem>>, vector<1x2x128xf32>,
    %c1 = arith.constant 1 : index
    %c0_11 = arith.constant 0 : index
    %c0_12 = arith.constant 0 : index
    %11 = vector.load %arg1[%c1, %c0_11, %c0_12] : memref<8x2x16xf32, #tpu.memory_space<vmem>>, vector<1x2x16xf32>
    %12 = vector.shape_cast %11 : vector<1x2x16xf32> to vector<2x16xf32>
    %cst_13 = arith.constant dense<0.000000e+00> : vector<2x128xf32>
    %13 = tpu.matmul %12, %0, %cst_13 {dimension_numbers = #tpu.dot_dimension_numbers<[1], [0], [0], [1], [0, 0, 1, 1], [], []>} : vector<2x16xf32>, vector<16x128xf32>, vector<2x128xf32> -> vector<2x128xf32>
    %14 = vector.broadcast %2 : vector<1x128xf32> to vector<2x128xf32>
    %15 = arith.addf %13, %14 : vector<2x128xf32>
    %c1_14 = arith.constant 1 : index
    %c0_15 = arith.constant 0 : index
    %c0_16 = arith.constant 0 : index
    %16 = vector.load %arg8[%c1_14, %c0_15, %c0_16] : memref<8x2x128xf32, #tpu.memory_space<vmem>>, vector<1x2x128xf32>
    %17 = vector.shape_cast %16 : vector<1x2x128xf32> to vector<2x128xf32>
    %18 = vector.shape_cast %15 : vector<2x128xf32> to vector<1x2x128xf32>
    tpu.vector_store %arg8[%c1_14, %c0_15, %c0_16], %18 {strides = array<i32>} : memref<8x2x128xf32, #tpu.memory_space<vmem>>, vector<1x2x128xf32>,
    %c2 = arith.constant 2 : index
    %c0_17 = arith.constant 0 : index
    %c0_18 = arith.constant 0 : index
    %19 = vector.load %arg1[%c2, %c0_17, %c0_18] : memref<8x2x16xf32, #tpu.memory_space<vmem>>, vector<1x2x16xf32>
    %20 = vector.shape_cast %19 : vector<1x2x16xf32> to vector<2x16xf32>
    %cst_19 = arith.constant dense<0.000000e+00> : vector<2x128xf32>
    %21 = tpu.matmul %20, %0, %cst_19 {dimension_numbers = #tpu.dot_dimension_numbers<[1], [0], [0], [1], [0, 0, 1, 1], [], []>} : vector<2x16xf32>, vector<16x128xf32>, vector<2x128xf32> -> vector<2x128xf32>
    %22 = vector.broadcast %2 : vector<1x128xf32> to vector<2x128xf32>
    %23 = arith.addf %21, %22 : vector<2x128xf32>
    %c2_20 = arith.constant 2 : index
    %c0_21 = arith.constant 0 : index
    %c0_22 = arith.constant 0 : index
    %24 = vector.load %arg8[%c2_20, %c0_21, %c0_22] : memref<8x2x128xf32, #tpu.memory_space<vmem>>, vector<1x2x128xf32>
    %25 = vector.shape_cast %24 : vector<1x2x128xf32> to vector<2x128xf32>
    %26 = vector.shape_cast %23 : vector<2x128xf32> to vector<1x2x128xf32>
    tpu.vector_store %arg8[%c2_20, %c0_21, %c0_22], %26 {strides = array<i32>} : memref<8x2x128xf32, #tpu.memory_space<vmem>>, vector<1x2x128xf32>,
    %c3 = arith.constant 3 : index
    %c0_23 = arith.constant 0 : index
    %c0_24 = arith.constant 0 : index
    %27 = vector.load %arg1[%c3, %c0_23, %c0_24] : memref<8x2x16xf32, #tpu.memory_space<vmem>>, vector<1x2x16xf32>
    %28 = vector.shape_cast %27 : vector<1x2x16xf32> to vector<2x16xf32>
    %cst_25 = arith.constant dense<0.000000e+00> : vector<2x128xf32>
    %29 = tpu.matmul %28, %0, %cst_25 {dimension_numbers = #tpu.dot_dimension_numbers<[1], [0], [0], [1], [0, 0, 1, 1], [], []>} : vector<2x16xf32>, vector<16x128xf32>, vector<2x128xf32> -> vector<2x128xf32>
    %30 = vector.broadcast %2 : vector<1x128xf32> to vector<2x128xf32>
    %31 = arith.addf %29, %30 : vector<2x128xf32>
    %c3_26 = arith.constant 3 : index
    %c0_27 = arith.constant 0 : index
    %c0_28 = arith.constant 0 : index
    %32 = vector.load %arg8[%c3_26, %c0_27, %c0_28] : memref<8x2x128xf32, #tpu.memory_space<vmem>>, vector<1x2x128xf32>
    %33 = vector.shape_cast %32 : vector<1x2x128xf32> to vector<2x128xf32>
    %34 = vector.shape_cast %31 : vector<2x128xf32> to vector<1x2x128xf32>
    tpu.vector_store %arg8[%c3_26, %c0_27, %c0_28], %34 {strides = array<i32>} : memref<8x2x128xf32, #tpu.memory_space<vmem>>, vector<1x2x128xf32>,
    %c4 = arith.constant 4 : index
    %c0_29 = arith.constant 0 : index
    %c0_30 = arith.constant 0 : index
    %35 = vector.load %arg1[%c4, %c0_29, %c0_30] : memref<8x2x16xf32, #tpu.memory_space<vmem>>, vector<1x2x16xf32>
    %36 = vector.shape_cast %35 : vector<1x2x16xf32> to vector<2x16xf32>
    %cst_31 = arith.constant dense<0.000000e+00> : vector<2x128xf32>
    %37 = tpu.matmul %36, %0, %cst_31 {dimension_numbers = #tpu.dot_dimension_numbers<[1], [0], [0], [1], [0, 0, 1, 1], [], []>} : vector<2x16xf32>, vector<16x128xf32>, vector<2x128xf32> -> vector<2x128xf32>
    %38 = vector.broadcast %2 : vector<1x128xf32> to vector<2x128xf32>
    %39 = arith.addf %37, %38 : vector<2x128xf32>
    %c4_32 = arith.constant 4 : index
    %c0_33 = arith.constant 0 : index
    %c0_34 = arith.constant 0 : index
    %40 = vector.load %arg8[%c4_32, %c0_33, %c0_34] : memref<8x2x128xf32, #tpu.memory_space<vmem>>, vector<1x2x128xf32>
    %41 = vector.shape_cast %40 : vector<1x2x128xf32> to vector<2x128xf32>
    %42 = vector.shape_cast %39 : vector<2x128xf32> to vector<1x2x128xf32>
    tpu.vector_store %arg8[%c4_32, %c0_33, %c0_34], %42 {strides = array<i32>} : memref<8x2x128xf32, #tpu.memory_space<vmem>>, vector<1x2x128xf32>,
    %c5 = arith.constant 5 : index
    %c0_35 = arith.constant 0 : index
    %c0_36 = arith.constant 0 : index
    %43 = vector.load %arg1[%c5, %c0_35, %c0_36] : memref<8x2x16xf32, #tpu.memory_space<vmem>>, vector<1x2x16xf32>
    %44 = vector.shape_cast %43 : vector<1x2x16xf32> to vector<2x16xf32>
    %cst_37 = arith.constant dense<0.000000e+00> : vector<2x128xf32>
    %45 = tpu.matmul %44, %0, %cst_37 {dimension_numbers = #tpu.dot_dimension_numbers<[1], [0], [0], [1], [0, 0, 1, 1], [], []>} : vector<2x16xf32>, vector<16x128xf32>, vector<2x128xf32> -> vector<2x128xf32>
    %46 = vector.broadcast %2 : vector<1x128xf32> to vector<2x128xf32>
    %47 = arith.addf %45, %46 : vector<2x128xf32>
    %c5_38 = arith.constant 5 : index
    %c0_39 = arith.constant 0 : index
    %c0_40 = arith.constant 0 : index
    %48 = vector.load %arg8[%c5_38, %c0_39, %c0_40] : memref<8x2x128xf32, #tpu.memory_space<vmem>>, vector<1x2x128xf32>
    %49 = vector.shape_cast %48 : vector<1x2x128xf32> to vector<2x128xf32>
    %50 = vector.shape_cast %47 : vector<2x128xf32> to vector<1x2x128xf32>
    tpu.vector_store %arg8[%c5_38, %c0_39, %c0_40], %50 {strides = array<i32>} : memref<8x2x128xf32, #tpu.memory_space<vmem>>, vector<1x2x128xf32>,
    %c6 = arith.constant 6 : index
    %c0_41 = arith.constant 0 : index
    %c0_42 = arith.constant 0 : index
    %51 = vector.load %arg1[%c6, %c0_41, %c0_42] : memref<8x2x16xf32, #tpu.memory_space<vmem>>, vector<1x2x16xf32>
    %52 = vector.shape_cast %51 : vector<1x2x16xf32> to vector<2x16xf32>
    %cst_43 = arith.constant dense<0.000000e+00> : vector<2x128xf32>
    %53 = tpu.matmul %52, %0, %cst_43 {dimension_numbers = #tpu.dot_dimension_numbers<[1], [0], [0], [1], [0, 0, 1, 1], [], []>} : vector<2x16xf32>, vector<16x128xf32>, vector<2x128xf32> -> vector<2x128xf32>
    %54 = vector.broadcast %2 : vector<1x128xf32> to vector<2x128xf32>
    %55 = arith.addf %53, %54 : vector<2x128xf32>
    %c6_44 = arith.constant 6 : index
    %c0_45 = arith.constant 0 : index
    %c0_46 = arith.constant 0 : index
    %56 = vector.load %arg8[%c6_44, %c0_45, %c0_46] : memref<8x2x128xf32, #tpu.memory_space<vmem>>, vector<1x2x128xf32>
    %57 = vector.shape_cast %56 : vector<1x2x128xf32> to vector<2x128xf32>
    %58 = vector.shape_cast %55 : vector<2x128xf32> to vector<1x2x128xf32>
    tpu.vector_store %arg8[%c6_44, %c0_45, %c0_46], %58 {strides = array<i32>} : memref<8x2x128xf32, #tpu.memory_space<vmem>>, vector<1x2x128xf32>,
    %c7 = arith.constant 7 : index
    %c0_47 = arith.constant 0 : index
    %c0_48 = arith.constant 0 : index
    %59 = vector.load %arg1[%c7, %c0_47, %c0_48] : memref<8x2x16xf32, #tpu.memory_space<vmem>>, vector<1x2x16xf32>
    %60 = vector.shape_cast %59 : vector<1x2x16xf32> to vector<2x16xf32>
    %cst_49 = arith.constant dense<0.000000e+00> : vector<2x128xf32>
    %61 = tpu.matmul %60, %0, %cst_49 {dimension_numbers = #tpu.dot_dimension_numbers<[1], [0], [0], [1], [0, 0, 1, 1], [], []>} : vector<2x16xf32>, vector<16x128xf32>, vector<2x128xf32> -> vector<2x128xf32>
    %62 = vector.broadcast %2 : vector<1x128xf32> to vector<2x128xf32>
    %63 = arith.addf %61, %62 : vector<2x128xf32>
    %c7_50 = arith.constant 7 : index
    %c0_51 = arith.constant 0 : index
    %c0_52 = arith.constant 0 : index
    %64 = vector.load %arg8[%c7_50, %c0_51, %c0_52] : memref<8x2x128xf32, #tpu.memory_space<vmem>>, vector<1x2x128xf32>
    %65 = vector.shape_cast %64 : vector<1x2x128xf32> to vector<2x128xf32>
    %66 = vector.shape_cast %63 : vector<2x128xf32> to vector<1x2x128xf32>
    tpu.vector_store %arg8[%c7_50, %c0_51, %c0_52], %66 {strides = array<i32>} : memref<8x2x128xf32, #tpu.memory_space<vmem>>, vector<1x2x128xf32>,
    %67 = tpu.iota {dimensions = array<i32: 1>} : vector<2x128xi32>
    %c64_i32 = arith.constant 64 : i32
    %68 = vector.broadcast %c64_i32 : i32 to vector<2x128xi32>
    %69 = arith.cmpi sge, %67, %68 : vector<2x128xi32>
    %c96_i32 = arith.constant 96 : i32
    %70 = vector.broadcast %c96_i32 : i32 to vector<2x128xi32>
    %71 = arith.cmpi slt, %67, %70 : vector<2x128xi32>
    %72 = arith.andi %69, %71 : vector<2x128xi1>
    %cst_53 = arith.constant 0.000000e+00 : f32
    %73 = vector.broadcast %cst_53 : f32 to vector<2x128xf32>
    %cst_54 = arith.constant 0.000000e+00 : f32
    %74 = vector.broadcast %cst_54 : f32 to vector<2x128xf32>
    %c0_i32 = arith.constant 0 : i32
    %75 = arith.index_cast %c0_i32 : i32 to index
    %c0_55 = arith.constant 0 : index
    %c0_56 = arith.constant 0 : index
    %76 = vector.load %arg8[%75, %c0_55, %c0_56] : memref<8x2x128xf32, #tpu.memory_space<vmem>>, vector<1x2x128xf32>
    %77 = vector.shape_cast %76 : vector<1x2x128xf32> to vector<2x128xf32>
    %cst_57 = arith.constant dense<0.000000e+00> : vector<2x128xf32>
    %78 = tpu.matmul %73, %1, %cst_57 {dimension_numbers = #tpu.dot_dimension_numbers<[1], [0], [0], [1], [0, 0, 1, 1], [], []>} : vector<2x128xf32>, vector<128x128xf32>, vector<2x128xf32> -> vector<2x128xf32>
    %79 = arith.addf %77, %78 : vector<2x128xf32>
    %80 = arith.negf %79 : vector<2x128xf32>
    %81 = math.exp %80 : vector<2x128xf32>
    %cst_58 = arith.constant 1.000000e+00 : f32
    %82 = vector.broadcast %cst_58 : f32 to vector<2x128xf32>
    %83 = arith.addf %82, %81 : vector<2x128xf32>
    %84 = arith.divf %82, %83 : vector<2x128xf32>
    %85 = math.tanh %79 : vector<2x128xf32>
    %86 = arith.select %72, %85, %84 : vector<2x128xi1>, vector<2x128xf32>
    %c96_i32_59 = arith.constant 96 : i32
    %87 = tpu.dynamic_rotate %86 by %c96_i32_59 dim 1 : vector<2x128xf32>, i32 -> vector<2x128xf32>
    %c64_i32_60 = arith.constant 64 : i32
    %88 = tpu.dynamic_rotate %86 by %c64_i32_60 dim 1 : vector<2x128xf32>, i32 -> vector<2x128xf32>
    %c32_i32 = arith.constant 32 : i32
    %89 = tpu.dynamic_rotate %86 by %c32_i32 dim 1 : vector<2x128xf32>, i32 -> vector<2x128xf32>
    %90 = arith.mulf %87, %74 : vector<2x128xf32>
    %91 = arith.mulf %86, %88 : vector<2x128xf32>
    %92 = arith.addf %90, %91 : vector<2x128xf32>
    %93 = math.tanh %92 : vector<2x128xf32>
    %94 = arith.mulf %89, %93 : vector<2x128xf32>
    %c1_i32 = arith.constant 1 : i32
    %95 = arith.index_cast %c1_i32 : i32 to index
    %c0_61 = arith.constant 0 : index
    %c0_62 = arith.constant 0 : index
    %96 = vector.load %arg8[%95, %c0_61, %c0_62] : memref<8x2x128xf32, #tpu.memory_space<vmem>>, vector<1x2x128xf32>
    %97 = vector.shape_cast %96 : vector<1x2x128xf32> to vector<2x128xf32>
    %cst_63 = arith.constant dense<0.000000e+00> : vector<2x128xf32>
    %98 = tpu.matmul %94, %1, %cst_63 {dimension_numbers = #tpu.dot_dimension_numbers<[1], [0], [0], [1], [0, 0, 1, 1], [], []>} : vector<2x128xf32>, vector<128x128xf32>, vector<2x128xf32> -> vector<2x128xf32>
    %99 = arith.addf %97, %98 : vector<2x128xf32>
    %100 = arith.negf %99 : vector<2x128xf32>
    %101 = math.exp %100 : vector<2x128xf32>
    %cst_64 = arith.constant 1.000000e+00 : f32
    %102 = vector.broadcast %cst_64 : f32 to vector<2x128xf32>
    %103 = arith.addf %102, %101 : vector<2x128xf32>
    %104 = arith.divf %102, %103 : vector<2x128xf32>
    %105 = math.tanh %99 : vector<2x128xf32>
    %106 = arith.select %72, %105, %104 : vector<2x128xi1>, vector<2x128xf32>
    %c96_i32_65 = arith.constant 96 : i32
    %107 = tpu.dynamic_rotate %106 by %c96_i32_65 dim 1 : vector<2x128xf32>, i32 -> vector<2x128xf32>
    %c64_i32_66 = arith.constant 64 : i32
    %108 = tpu.dynamic_rotate %106 by %c64_i32_66 dim 1 : vector<2x128xf32>, i32 -> vector<2x128xf32>
    %c32_i32_67 = arith.constant 32 : i32
    %109 = tpu.dynamic_rotate %106 by %c32_i32_67 dim 1 : vector<2x128xf32>, i32 -> vector<2x128xf32>
    %110 = arith.mulf %107, %92 : vector<2x128xf32>
    %111 = arith.mulf %106, %108 : vector<2x128xf32>
    %112 = arith.addf %110, %111 : vector<2x128xf32>
    %113 = math.tanh %112 : vector<2x128xf32>
    %114 = arith.mulf %109, %113 : vector<2x128xf32>
    %c2_i32 = arith.constant 2 : i32
    %115 = arith.index_cast %c2_i32 : i32 to index
    %c0_68 = arith.constant 0 : index
    %c0_69 = arith.constant 0 : index
    %116 = vector.load %arg8[%115, %c0_68, %c0_69] : memref<8x2x128xf32, #tpu.memory_space<vmem>>, vector<1x2x128xf32>
    %117 = vector.shape_cast %116 : vector<1x2x128xf32> to vector<2x128xf32>
    %cst_70 = arith.constant dense<0.000000e+00> : vector<2x128xf32>
    %118 = tpu.matmul %114, %1, %cst_70 {dimension_numbers = #tpu.dot_dimension_numbers<[1], [0], [0], [1], [0, 0, 1, 1], [], []>} : vector<2x128xf32>, vector<128x128xf32>, vector<2x128xf32> -> vector<2x128xf32>
    %119 = arith.addf %117, %118 : vector<2x128xf32>
    %120 = arith.negf %119 : vector<2x128xf32>
    %121 = math.exp %120 : vector<2x128xf32>
    %cst_71 = arith.constant 1.000000e+00 : f32
    %122 = vector.broadcast %cst_71 : f32 to vector<2x128xf32>
    %123 = arith.addf %122, %121 : vector<2x128xf32>
    %124 = arith.divf %122, %123 : vector<2x128xf32>
    %125 = math.tanh %119 : vector<2x128xf32>
    %126 = arith.select %72, %125, %124 : vector<2x128xi1>, vector<2x128xf32>
    %c96_i32_72 = arith.constant 96 : i32
    %127 = tpu.dynamic_rotate %126 by %c96_i32_72 dim 1 : vector<2x128xf32>, i32 -> vector<2x128xf32>
    %c64_i32_73 = arith.constant 64 : i32
    %128 = tpu.dynamic_rotate %126 by %c64_i32_73 dim 1 : vector<2x128xf32>, i32 -> vector<2x128xf32>
    %c32_i32_74 = arith.constant 32 : i32
    %129 = tpu.dynamic_rotate %126 by %c32_i32_74 dim 1 : vector<2x128xf32>, i32 -> vector<2x128xf32>
    %130 = arith.mulf %127, %112 : vector<2x128xf32>
    %131 = arith.mulf %126, %128 : vector<2x128xf32>
    %132 = arith.addf %130, %131 : vector<2x128xf32>
    %133 = math.tanh %132 : vector<2x128xf32>
    %134 = arith.mulf %129, %133 : vector<2x128xf32>
    %c3_i32 = arith.constant 3 : i32
    %135 = arith.index_cast %c3_i32 : i32 to index
    %c0_75 = arith.constant 0 : index
    %c0_76 = arith.constant 0 : index
    %136 = vector.load %arg8[%135, %c0_75, %c0_76] : memref<8x2x128xf32, #tpu.memory_space<vmem>>, vector<1x2x128xf32>
    %137 = vector.shape_cast %136 : vector<1x2x128xf32> to vector<2x128xf32>
    %cst_77 = arith.constant dense<0.000000e+00> : vector<2x128xf32>
    %138 = tpu.matmul %134, %1, %cst_77 {dimension_numbers = #tpu.dot_dimension_numbers<[1], [0], [0], [1], [0, 0, 1, 1], [], []>} : vector<2x128xf32>, vector<128x128xf32>, vector<2x128xf32> -> vector<2x128xf32>
    %139 = arith.addf %137, %138 : vector<2x128xf32>
    %140 = arith.negf %139 : vector<2x128xf32>
    %141 = math.exp %140 : vector<2x128xf32>
    %cst_78 = arith.constant 1.000000e+00 : f32
    %142 = vector.broadcast %cst_78 : f32 to vector<2x128xf32>
    %143 = arith.addf %142, %141 : vector<2x128xf32>
    %144 = arith.divf %142, %143 : vector<2x128xf32>
    %145 = math.tanh %139 : vector<2x128xf32>
    %146 = arith.select %72, %145, %144 : vector<2x128xi1>, vector<2x128xf32>
    %c96_i32_79 = arith.constant 96 : i32
    %147 = tpu.dynamic_rotate %146 by %c96_i32_79 dim 1 : vector<2x128xf32>, i32 -> vector<2x128xf32>
    %c64_i32_80 = arith.constant 64 : i32
    %148 = tpu.dynamic_rotate %146 by %c64_i32_80 dim 1 : vector<2x128xf32>, i32 -> vector<2x128xf32>
    %c32_i32_81 = arith.constant 32 : i32
    %149 = tpu.dynamic_rotate %146 by %c32_i32_81 dim 1 : vector<2x128xf32>, i32 -> vector<2x128xf32>
    %150 = arith.mulf %147, %132 : vector<2x128xf32>
    %151 = arith.mulf %146, %148 : vector<2x128xf32>
    %152 = arith.addf %150, %151 : vector<2x128xf32>
    %153 = math.tanh %152 : vector<2x128xf32>
    %154 = arith.mulf %149, %153 : vector<2x128xf32>
    %c4_i32 = arith.constant 4 : i32
    %155 = arith.index_cast %c4_i32 : i32 to index
    %c0_82 = arith.constant 0 : index
    %c0_83 = arith.constant 0 : index
    %156 = vector.load %arg8[%155, %c0_82, %c0_83] : memref<8x2x128xf32, #tpu.memory_space<vmem>>, vector<1x2x128xf32>
    %157 = vector.shape_cast %156 : vector<1x2x128xf32> to vector<2x128xf32>
    %cst_84 = arith.constant dense<0.000000e+00> : vector<2x128xf32>
    %158 = tpu.matmul %154, %1, %cst_84 {dimension_numbers = #tpu.dot_dimension_numbers<[1], [0], [0], [1], [0, 0, 1, 1], [], []>} : vector<2x128xf32>, vector<128x128xf32>, vector<2x128xf32> -> vector<2x128xf32>
    %159 = arith.addf %157, %158 : vector<2x128xf32>
    %160 = arith.negf %159 : vector<2x128xf32>
    %161 = math.exp %160 : vector<2x128xf32>
    %cst_85 = arith.constant 1.000000e+00 : f32
    %162 = vector.broadcast %cst_85 : f32 to vector<2x128xf32>
    %163 = arith.addf %162, %161 : vector<2x128xf32>
    %164 = arith.divf %162, %163 : vector<2x128xf32>
    %165 = math.tanh %159 : vector<2x128xf32>
    %166 = arith.select %72, %165, %164 : vector<2x128xi1>, vector<2x128xf32>
    %c96_i32_86 = arith.constant 96 : i32
    %167 = tpu.dynamic_rotate %166 by %c96_i32_86 dim 1 : vector<2x128xf32>, i32 -> vector<2x128xf32>
    %c64_i32_87 = arith.constant 64 : i32
    %168 = tpu.dynamic_rotate %166 by %c64_i32_87 dim 1 : vector<2x128xf32>, i32 -> vector<2x128xf32>
    %c32_i32_88 = arith.constant 32 : i32
    %169 = tpu.dynamic_rotate %166 by %c32_i32_88 dim 1 : vector<2x128xf32>, i32 -> vector<2x128xf32>
    %170 = arith.mulf %167, %152 : vector<2x128xf32>
    %171 = arith.mulf %166, %168 : vector<2x128xf32>
    %172 = arith.addf %170, %171 : vector<2x128xf32>
    %173 = math.tanh %172 : vector<2x128xf32>
    %174 = arith.mulf %169, %173 : vector<2x128xf32>
    %c5_i32 = arith.constant 5 : i32
    %175 = arith.index_cast %c5_i32 : i32 to index
    %c0_89 = arith.constant 0 : index
    %c0_90 = arith.constant 0 : index
    %176 = vector.load %arg8[%175, %c0_89, %c0_90] : memref<8x2x128xf32, #tpu.memory_space<vmem>>, vector<1x2x128xf32>
    %177 = vector.shape_cast %176 : vector<1x2x128xf32> to vector<2x128xf32>
    %cst_91 = arith.constant dense<0.000000e+00> : vector<2x128xf32>
    %178 = tpu.matmul %174, %1, %cst_91 {dimension_numbers = #tpu.dot_dimension_numbers<[1], [0], [0], [1], [0, 0, 1, 1], [], []>} : vector<2x128xf32>, vector<128x128xf32>, vector<2x128xf32> -> vector<2x128xf32>
    %179 = arith.addf %177, %178 : vector<2x128xf32>
    %180 = arith.negf %179 : vector<2x128xf32>
    %181 = math.exp %180 : vector<2x128xf32>
    %cst_92 = arith.constant 1.000000e+00 : f32
    %182 = vector.broadcast %cst_92 : f32 to vector<2x128xf32>
    %183 = arith.addf %182, %181 : vector<2x128xf32>
    %184 = arith.divf %182, %183 : vector<2x128xf32>
    %185 = math.tanh %179 : vector<2x128xf32>
    %186 = arith.select %72, %185, %184 : vector<2x128xi1>, vector<2x128xf32>
    %c96_i32_93 = arith.constant 96 : i32
    %187 = tpu.dynamic_rotate %186 by %c96_i32_93 dim 1 : vector<2x128xf32>, i32 -> vector<2x128xf32>
    %c64_i32_94 = arith.constant 64 : i32
    %188 = tpu.dynamic_rotate %186 by %c64_i32_94 dim 1 : vector<2x128xf32>, i32 -> vector<2x128xf32>
    %c32_i32_95 = arith.constant 32 : i32
    %189 = tpu.dynamic_rotate %186 by %c32_i32_95 dim 1 : vector<2x128xf32>, i32 -> vector<2x128xf32>
    %190 = arith.mulf %187, %172 : vector<2x128xf32>
    %191 = arith.mulf %186, %188 : vector<2x128xf32>
    %192 = arith.addf %190, %191 : vector<2x128xf32>
    %193 = math.tanh %192 : vector<2x128xf32>
    %194 = arith.mulf %189, %193 : vector<2x128xf32>
    %c6_i32 = arith.constant 6 : i32
    %195 = arith.index_cast %c6_i32 : i32 to index
    %c0_96 = arith.constant 0 : index
    %c0_97 = arith.constant 0 : index
    %196 = vector.load %arg8[%195, %c0_96, %c0_97] : memref<8x2x128xf32, #tpu.memory_space<vmem>>, vector<1x2x128xf32>
    %197 = vector.shape_cast %196 : vector<1x2x128xf32> to vector<2x128xf32>
    %cst_98 = arith.constant dense<0.000000e+00> : vector<2x128xf32>
    %198 = tpu.matmul %194, %1, %cst_98 {dimension_numbers = #tpu.dot_dimension_numbers<[1], [0], [0], [1], [0, 0, 1, 1], [], []>} : vector<2x128xf32>, vector<128x128xf32>, vector<2x128xf32> -> vector<2x128xf32>
    %199 = arith.addf %197, %198 : vector<2x128xf32>
    %200 = arith.negf %199 : vector<2x128xf32>
    %201 = math.exp %200 : vector<2x128xf32>
    %cst_99 = arith.constant 1.000000e+00 : f32
    %202 = vector.broadcast %cst_99 : f32 to vector<2x128xf32>
    %203 = arith.addf %202, %201 : vector<2x128xf32>
    %204 = arith.divf %202, %203 : vector<2x128xf32>
    %205 = math.tanh %199 : vector<2x128xf32>
    %206 = arith.select %72, %205, %204 : vector<2x128xi1>, vector<2x128xf32>
    %c96_i32_100 = arith.constant 96 : i32
    %207 = tpu.dynamic_rotate %206 by %c96_i32_100 dim 1 : vector<2x128xf32>, i32 -> vector<2x128xf32>
    %c64_i32_101 = arith.constant 64 : i32
    %208 = tpu.dynamic_rotate %206 by %c64_i32_101 dim 1 : vector<2x128xf32>, i32 -> vector<2x128xf32>
    %c32_i32_102 = arith.constant 32 : i32
    %209 = tpu.dynamic_rotate %206 by %c32_i32_102 dim 1 : vector<2x128xf32>, i32 -> vector<2x128xf32>
    %210 = arith.mulf %207, %192 : vector<2x128xf32>
    %211 = arith.mulf %206, %208 : vector<2x128xf32>
    %212 = arith.addf %210, %211 : vector<2x128xf32>
    %213 = math.tanh %212 : vector<2x128xf32>
    %214 = arith.mulf %209, %213 : vector<2x128xf32>
    %c7_i32 = arith.constant 7 : i32
    %215 = arith.index_cast %c7_i32 : i32 to index
    %c0_103 = arith.constant 0 : index
    %c0_104 = arith.constant 0 : index
    %216 = vector.load %arg8[%215, %c0_103, %c0_104] : memref<8x2x128xf32, #tpu.memory_space<vmem>>, vector<1x2x128xf32>
    %217 = vector.shape_cast %216 : vector<1x2x128xf32> to vector<2x128xf32>
    %cst_105 = arith.constant dense<0.000000e+00> : vector<2x128xf32>
    %218 = tpu.matmul %214, %1, %cst_105 {dimension_numbers = #tpu.dot_dimension_numbers<[1], [0], [0], [1], [0, 0, 1, 1], [], []>} : vector<2x128xf32>, vector<128x128xf32>, vector<2x128xf32> -> vector<2x128xf32>
    %219 = arith.addf %217, %218 : vector<2x128xf32>
    %220 = arith.negf %219 : vector<2x128xf32>
    %221 = math.exp %220 : vector<2x128xf32>
    %cst_106 = arith.constant 1.000000e+00 : f32
    %222 = vector.broadcast %cst_106 : f32 to vector<2x128xf32>
    %223 = arith.addf %222, %221 : vector<2x128xf32>
    %224 = arith.divf %222, %223 : vector<2x128xf32>
    %225 = math.tanh %219 : vector<2x128xf32>
    %226 = arith.select %72, %225, %224 : vector<2x128xi1>, vector<2x128xf32>
    %c96_i32_107 = arith.constant 96 : i32
    %227 = tpu.dynamic_rotate %226 by %c96_i32_107 dim 1 : vector<2x128xf32>, i32 -> vector<2x128xf32>
    %c64_i32_108 = arith.constant 64 : i32
    %228 = tpu.dynamic_rotate %226 by %c64_i32_108 dim 1 : vector<2x128xf32>, i32 -> vector<2x128xf32>
    %c32_i32_109 = arith.constant 32 : i32
    %229 = tpu.dynamic_rotate %226 by %c32_i32_109 dim 1 : vector<2x128xf32>, i32 -> vector<2x128xf32>
    %230 = arith.mulf %227, %212 : vector<2x128xf32>
    %231 = arith.mulf %226, %228 : vector<2x128xf32>
    %232 = arith.addf %230, %231 : vector<2x128xf32>
    %233 = math.tanh %232 : vector<2x128xf32>
    %234 = arith.mulf %229, %233 : vector<2x128xf32>
    %c8_i32 = arith.constant 8 : i32
    %c0_110 = arith.constant 0 : index
    %c0_111 = arith.constant 0 : index
    %235 = vector.load %arg5[%c0_110, %c0_111] : memref<128x2xf32, #tpu.memory_space<vmem>>, vector<128x2xf32>
    %cst_112 = arith.constant dense<0.000000e+00> : vector<2x2xf32>
    %236 = tpu.matmul %234, %235, %cst_112 {dimension_numbers = #tpu.dot_dimension_numbers<[1], [0], [0], [1], [0, 0, 1, 1], [], []>} : vector<2x128xf32>, vector<128x2xf32>, vector<2x2xf32> -> vector<2x2xf32>
    %c0_113 = arith.constant 0 : index
    %c0_114 = arith.constant 0 : index
    %237 = vector.load %arg6[%c0_113, %c0_114] : memref<1x2xf32, #tpu.memory_space<vmem>>, vector<1x2xf32>
    %238 = vector.broadcast %237 : vector<1x2xf32> to vector<2x2xf32>
    %239 = arith.addf %236, %238 : vector<2x2xf32>
    %c0_115 = arith.constant 0 : index
    %c0_116 = arith.constant 0 : index
    %240 = vector.load %arg7[%c0_115, %c0_116] : memref<2x2xf32, #tpu.memory_space<vmem>>, vector<2x2xf32>
    tpu.vector_store %arg7[%c0_115, %c0_116], %239 {strides = array<i32>} : memref<2x2xf32, #tpu.memory_space<vmem>>, vector<2x2xf32>,
    return
  }
  func.func @transform_0(%arg0: i32) -> (i32, i32, i32) {
    %c0_i32 = arith.constant 0 : i32
    %c0_i32_0 = arith.constant 0 : i32
    %c0_i32_1 = arith.constant 0 : i32
    return %c0_i32, %arg0, %c0_i32_0 : i32, i32, i32
  }
  func.func @transform_1(%arg0: i32) -> (i32, i32) {
    %c0_i32 = arith.constant 0 : i32
    %c0_i32_0 = arith.constant 0 : i32
    %c0_i32_1 = arith.constant 0 : i32
    return %c0_i32, %c0_i32_0 : i32, i32
  }
  func.func @transform_2(%arg0: i32) -> (i32, i32) {
    %c0_i32 = arith.constant 0 : i32
    %c0_i32_0 = arith.constant 0 : i32
    %c0_i32_1 = arith.constant 0 : i32
    return %c0_i32, %c0_i32_0 : i32, i32
  }
  func.func @transform_3(%arg0: i32) -> (i32, i32) {
    %c0_i32 = arith.constant 0 : i32
    %c0_i32_0 = arith.constant 0 : i32
    %c0_i32_1 = arith.constant 0 : i32
    return %c0_i32, %c0_i32_0 : i32, i32
  }
  func.func @transform_4(%arg0: i32) -> (i32, i32) {
    %c0_i32 = arith.constant 0 : i32
    %c0_i32_0 = arith.constant 0 : i32
    %c0_i32_1 = arith.constant 0 : i32
    return %c0_i32, %c0_i32_0 : i32, i32
  }
  func.func @transform_5(%arg0: i32) -> (i32, i32) {
    %c0_i32 = arith.constant 0 : i32
    %c0_i32_0 = arith.constant 0 : i32
    %c0_i32_1 = arith.constant 0 : i32
    return %c0_i32, %c0_i32_0 : i32, i32
  }
  func.func @transform_6(%arg0: i32) -> (i32, i32) {
    %c0_i32 = arith.constant 0 : i32
    %c0_i32_0 = arith.constant 0 : i32
    return %arg0, %c0_i32 : i32, i32
  }
}

</mosaic_0001>

<llo_original>
// kernel: tpu_custom_call.1
$region0: #{tpu_custom_call.1}
  #allocation0 [shape = 'u32[]', space=smem, size = 0x4, offset = 0x4, fixed_abs, tag = 'smem constant byte address 0x4 - core index']
  #allocation1 [shape = 'u32[72,128]{1,0:T(1,128)}', space=vmem, size = 0x9000, scoped, tag = 'internal scratch']
  #allocation2 [shape = 'f32[8,2,128]{2,1,0:T(2,128)}', space=vmem, size = 0x2000, scoped, tag = 'scratch operand']
  %s0 = inlined_call_operand.hbm [shape: f32[8,2,16], index: 0, kind: input, shape index: {}]
  %s1 = inlined_call_operand.hbm [shape: f32[16,128], index: 1, kind: input, shape index: {}]
  %s2 = inlined_call_operand.vmem [shape: f32[128,128], index: 2, kind: input, shape index: {}]
  %s3 = inlined_call_operand.vmem [shape: f32[1,128], index: 3, kind: input, shape index: {}]
  %s4 = inlined_call_operand.vmem [shape: f32[128,2], index: 4, kind: input, shape index: {}]
  %s5 = inlined_call_operand.vmem [shape: f32[1,2], index: 5, kind: input, shape index: {}]
  %s6 = inlined_call_operand.hbm [shape: f32[2,2], index: 6, kind: output, shape index: {}]
  %s7 = sld [smem:[#allocation0]]
  $region42: #{tpu_custom_call.1} parent=0
    _
  %s9 = ssub.s32 1, %s7
  %s10 = scalar_select 0, %s9, %s7
  $region1: #{tpu_custom_call.1} parent=0
    #allocation3 [shape = 'u8[8192]{0}', space=vmem, size = 0x2000, scoped, tag = 'input window, operand 0, single buffered']
    #allocation4 [shape = 's32[1]{0}', space=sflag, size = 0x4, scoped, tag = 'scoped memory for tpu_custom_call.1']
    #allocation5 [shape = 's32[1]{0}', space=sflag, size = 0x4, scoped, tag = 'scoped memory for tpu_custom_call.1']
    #allocation6 [shape = 'u8[8192]{0}', space=vmem, size = 0x2000, scoped, tag = 'input window, operand 1, single buffered']
    #allocation7 [shape = 's32[1]{0}', space=sflag, size = 0x4, scoped, tag = 'scoped memory for tpu_custom_call.1']
    #allocation8 [shape = 'u8[1024]{0}', space=vmem, size = 0x400, scoped, tag = 'output window, operand 0, single buffered']
    %11 = vsyncpa [#allocation4], 0
    %12 = vsyncpa [#allocation7], 0
    %13 = vsyncpa [#allocation5], 0
    // Predicated region
    $region2: #{tpu_custom_call.1} parent=1 // pred_check
      _
    $region3: #{tpu_custom_call.1} parent=1 // pred_check_branch
      %15 = sbr.rel (0) target = $region5
    $region4: #{tpu_custom_call.1} parent=1 // pred_region
      %17 = vsyncadd [#allocation4], 0
      %s18 = sshll.u32 %s0, 4
      %s19 = int_to_ptr.hbm [resolvable:$true] %s18
      %s20 = sshll.u32 [#allocation3], 4
      %s21 = int_to_ptr.vmem [resolvable:$true] %s20
      %26 = dma.hbm_to_vmem [thread:$0]  %s19, 256, %s21, [#allocation4], 32, 32, 2
    $region5: #{tpu_custom_call.1} parent=1 // pred_fallthru
      _
    // Predicated region
    $region6: #{tpu_custom_call.1} parent=1 // pred_check
      _
    $region7: #{tpu_custom_call.1} parent=1 // pred_check_branch
      %28 = sbr.rel (0) target = $region9
    $region8: #{tpu_custom_call.1} parent=1 // pred_region
      %30 = vsyncadd [#allocation7], 0
      %s31 = sshll.u32 %s1, 4
      %s32 = int_to_ptr.hbm [resolvable:$true] %s31
      %s33 = sshll.u32 [#allocation6], 4
      %s34 = int_to_ptr.vmem [resolvable:$true] %s33
      %39 = dma.hbm_to_vmem [thread:$0]  %s32, 256, %s34, [#allocation7], 128, 128, 8
    $region9: #{tpu_custom_call.1} parent=1 // pred_fallthru
      _
    // Predicated region
    $region10: #{tpu_custom_call.1} parent=1 // pred_check
      _
    $region11: #{tpu_custom_call.1} parent=1 // pred_check_branch
      %41 = sbr.rel (0) target = $region13
    $region12: #{tpu_custom_call.1} parent=1 // pred_region
      _
    $region13: #{tpu_custom_call.1} parent=1 // pred_fallthru
      _
    // Predicated region
    $region14: #{tpu_custom_call.1} parent=1 // pred_check
      _
    $region15: #{tpu_custom_call.1} parent=1 // pred_check_branch
      %43 = sbr.rel (0) target = $region17
    $region16: #{tpu_custom_call.1} parent=1 // pred_region
      _
    $region17: #{tpu_custom_call.1} parent=1 // pred_fallthru
      _
    // Predicated region
    $region18: #{tpu_custom_call.1} parent=1 // pred_check
      _
    $region19: #{tpu_custom_call.1} parent=1 // pred_check_branch
      %45 = sbr.rel (0) target = $region21
    $region20: #{tpu_custom_call.1} parent=1 // pred_region
      _
    $region21: #{tpu_custom_call.1} parent=1 // pred_fallthru
      _
    // Predicated region
    $region22: #{tpu_custom_call.1} parent=1 // pred_check
      _
    $region23: #{tpu_custom_call.1} parent=1 // pred_check_branch
      %47 = sbr.rel (0) target = $region25
    $region24: #{tpu_custom_call.1} parent=1 // pred_region
      _
    $region25: #{tpu_custom_call.1} parent=1 // pred_fallthru
      _
    // Predicated region
    $region26: #{tpu_custom_call.1} parent=1 // pred_check
      _
    $region27: #{tpu_custom_call.1} parent=1 // pred_check_branch
      %49 = sbr.rel (0) target = $region29
    $region28: #{tpu_custom_call.1} parent=1 // pred_region
      %51 = dma.done [#allocation4], 256
    $region29: #{tpu_custom_call.1} parent=1 // pred_fallthru
      _
    // Predicated region
    $region30: #{tpu_custom_call.1} parent=1 // pred_check
      _
    $region31: #{tpu_custom_call.1} parent=1 // pred_check_branch
      %53 = sbr.rel (0) target = $region33
    $region32: #{tpu_custom_call.1} parent=1 // pred_region
      %55 = dma.done [#allocation7], 256
    $region33: #{tpu_custom_call.1} parent=1 // pred_fallthru
      _
    %v56 = vld [vmem:[#allocation6] sm:$0xff]
    %v57 = vld [vmem:[#allocation6 + $0x8] sm:$0xff]
    %v58 = vld [vmem:[%s2] sm:$0xff]
    %v59 = vld [vmem:[%s2 + $0x8] sm:$0xff]
    %v60 = vld [vmem:[%s2 + $0x10] sm:$0xff]
    %v61 = vld [vmem:[%s2 + $0x18] sm:$0xff]
    %v62 = vld [vmem:[%s2 + $0x20] sm:$0xff]
    %v63 = vld [vmem:[%s2 + $0x28] sm:$0xff]
    %v64 = vld [vmem:[%s2 + $0x30] sm:$0xff]
    %v65 = vld [vmem:[%s2 + $0x38] sm:$0xff]
    %v66 = vld [vmem:[%s2 + $0x40] sm:$0xff]
    %v67 = vld [vmem:[%s2 + $0x48] sm:$0xff]
    %v68 = vld [vmem:[%s2 + $0x50] sm:$0xff]
    %v69 = vld [vmem:[%s2 + $0x58] sm:$0xff]
    %v70 = vld [vmem:[%s2 + $0x60] sm:$0xff]
    %v71 = vld [vmem:[%s2 + $0x68] sm:$0xff]
    %v72 = vld [vmem:[%s2 + $0x70] sm:$0xff]
    %v73 = vld [vmem:[%s2 + $0x78] sm:$0xff]
    %v74 = vld [vmem:[%s3] sm:$0x1]
    %v75 = vld [vmem:[#allocation3] sm:$0x3]
    %v77 = vperm.slane %v74, 0
    %vm79 = vcmask 130048
    %v81 = vsel %vm79, %v75, 0
    %83 = vmatpush.msra.mxu0 0.0
    %84 = vmatpush.msra.mxu0 0.0
    %85 = vmatpush.msra.mxu0 0.0
    %86 = vmatpush.msra.mxu0 0.0
    %87 = vmatpush.msra.mxu0 0.0
    %88 = vmatpush.msra.mxu0 0.0
    %89 = vmatpush.msra.mxu0 0.0
    %90 = vmatpush.msra.mxu0 0.0
    %91 = vmatpush.msra.mxu0 0.0
    %92 = vmatpush.msra.mxu0 0.0
    %93 = vmatpush.msra.mxu0 0.0
    %94 = vmatpush.msra.mxu0 0.0
    %95 = vmatpush.msra.mxu0 0.0
    %96 = vmatpush.msra.mxu0 0.0
    %97 = vmatpush.msra.mxu0 %v57
    %98 = vmatpush.msra.mxu0 %v56
    %99 = vmatmul.f32.gmra.mxu0 %v81
    %v100 = vpop.f32.mrf.mxu0
    %v101 = vadd.f32 %v77, %v100
    %102 = vdwg.mxu0
    %103 = vst [vmem:[#allocation2] sm:$0x3] %v101
    %s104 = scalar_lea.vmem [#allocation3], 2
    %v105 = vld [vmem:[%s104] sm:$0x3]
    %v107 = vsel %vm79, %v105, 0
    %109 = vmatpush.msra.mxu0 0.0
    %110 = vmatpush.msra.mxu0 0.0
    %111 = vmatpush.msra.mxu0 0.0
    %112 = vmatpush.msra.mxu0 0.0
    %113 = vmatpush.msra.mxu0 0.0
    %114 = vmatpush.msra.mxu0 0.0
    %115 = vmatpush.msra.mxu0 0.0
    %116 = vmatpush.msra.mxu0 0.0
    %117 = vmatpush.msra.mxu0 0.0
    %118 = vmatpush.msra.mxu0 0.0
    %119 = vmatpush.msra.mxu0 0.0
    %120 = vmatpush.msra.mxu0 0.0
    %121 = vmatpush.msra.mxu0 0.0
    %122 = vmatpush.msra.mxu0 0.0
    %123 = vmatpush.msra.mxu0 %v57
    %124 = vmatpush.msra.mxu0 %v56
    %125 = vmatmul.f32.gmra.mxu0 %v107
    %v126 = vpop.f32.mrf.mxu0
    %v127 = vadd.f32 %v77, %v126
    %128 = vdwg.mxu0
    %s129 = scalar_lea.vmem [#allocation2], 2
    %130 = vst [vmem:[%s129] sm:$0x3] %v127
    %s131 = scalar_lea.vmem [#allocation3], 4
    %v132 = vld [vmem:[%s131] sm:$0x3]
    %v134 = vsel %vm79, %v132, 0
    %136 = vmatpush.msra.mxu0 0.0
    %137 = vmatpush.msra.mxu0 0.0
    %138 = vmatpush.msra.mxu0 0.0
    %139 = vmatpush.msra.mxu0 0.0
    %140 = vmatpush.msra.mxu0 0.0
    %141 = vmatpush.msra.mxu0 0.0
    %142 = vmatpush.msra.mxu0 0.0
    %143 = vmatpush.msra.mxu0 0.0
    %144 = vmatpush.msra.mxu0 0.0
    %145 = vmatpush.msra.mxu0 0.0
    %146 = vmatpush.msra.mxu0 0.0
    %147 = vmatpush.msra.mxu0 0.0
    %148 = vmatpush.msra.mxu0 0.0
    %149 = vmatpush.msra.mxu0 0.0
    %150 = vmatpush.msra.mxu0 %v57
    %151 = vmatpush.msra.mxu0 %v56
    %152 = vmatmul.f32.gmra.mxu0 %v134
    %v153 = vpop.f32.mrf.mxu0
    %v154 = vadd.f32 %v77, %v153
    %155 = vdwg.mxu0
    %s156 = scalar_lea.vmem [#allocation2], 4
    %157 = vst [vmem:[%s156] sm:$0x3] %v154
    %s158 = scalar_lea.vmem [#allocation3], 6
    %v159 = vld [vmem:[%s158] sm:$0x3]
    %v161 = vsel %vm79, %v159, 0
    %163 = vmatpush.msra.mxu0 0.0
    %164 = vmatpush.msra.mxu0 0.0
    %165 = vmatpush.msra.mxu0 0.0
    %166 = vmatpush.msra.mxu0 0.0
    %167 = vmatpush.msra.mxu0 0.0
    %168 = vmatpush.msra.mxu0 0.0
    %169 = vmatpush.msra.mxu0 0.0
    %170 = vmatpush.msra.mxu0 0.0
    %171 = vmatpush.msra.mxu0 0.0
    %172 = vmatpush.msra.mxu0 0.0
    %173 = vmatpush.msra.mxu0 0.0
    %174 = vmatpush.msra.mxu0 0.0
    %175 = vmatpush.msra.mxu0 0.0
    %176 = vmatpush.msra.mxu0 0.0
    %177 = vmatpush.msra.mxu0 %v57
    %178 = vmatpush.msra.mxu0 %v56
    %179 = vmatmul.f32.gmra.mxu0 %v161
    %v180 = vpop.f32.mrf.mxu0
    %v181 = vadd.f32 %v77, %v180
    %182 = vdwg.mxu0
    %s183 = scalar_lea.vmem [#allocation2], 6
    %184 = vst [vmem:[%s183] sm:$0x3] %v181
    %s185 = scalar_lea.vmem [#allocation3], 8
    %v186 = vld [vmem:[%s185] sm:$0x3]
    %v188 = vsel %vm79, %v186, 0
    %190 = vmatpush.msra.mxu0 0.0
    %191 = vmatpush.msra.mxu0 0.0
    %192 = vmatpush.msra.mxu0 0.0
    %193 = vmatpush.msra.mxu0 0.0
    %194 = vmatpush.msra.mxu0 0.0
    %195 = vmatpush.msra.mxu0 0.0
    %196 = vmatpush.msra.mxu0 0.0
    %197 = vmatpush.msra.mxu0 0.0
    %198 = vmatpush.msra.mxu0 0.0
    %199 = vmatpush.msra.mxu0 0.0
    %200 = vmatpush.msra.mxu0 0.0
    %201 = vmatpush.msra.mxu0 0.0
    %202 = vmatpush.msra.mxu0 0.0
    %203 = vmatpush.msra.mxu0 0.0
    %204 = vmatpush.msra.mxu0 %v57
    %205 = vmatpush.msra.mxu0 %v56
    %206 = vmatmul.f32.gmra.mxu0 %v188
    %v207 = vpop.f32.mrf.mxu0
    %v208 = vadd.f32 %v77, %v207
    %209 = vdwg.mxu0
    %s210 = scalar_lea.vmem [#allocation2], 8
    %211 = vst [vmem:[%s210] sm:$0x3] %v208
    %s212 = scalar_lea.vmem [#allocation3], 10
    %v213 = vld [vmem:[%s212] sm:$0x3]
    %v215 = vsel %vm79, %v213, 0
    %217 = vmatpush.msra.mxu0 0.0
    %218 = vmatpush.msra.mxu0 0.0
    %219 = vmatpush.msra.mxu0 0.0
    %220 = vmatpush.msra.mxu0 0.0
    %221 = vmatpush.msra.mxu0 0.0
    %222 = vmatpush.msra.mxu0 0.0
    %223 = vmatpush.msra.mxu0 0.0
    %224 = vmatpush.msra.mxu0 0.0
    %225 = vmatpush.msra.mxu0 0.0
    %226 = vmatpush.msra.mxu0 0.0
    %227 = vmatpush.msra.mxu0 0.0
    %228 = vmatpush.msra.mxu0 0.0
    %229 = vmatpush.msra.mxu0 0.0
    %230 = vmatpush.msra.mxu0 0.0
    %231 = vmatpush.msra.mxu0 %v57
    %232 = vmatpush.msra.mxu0 %v56
    %233 = vmatmul.f32.gmra.mxu0 %v215
    %v234 = vpop.f32.mrf.mxu0
    %v235 = vadd.f32 %v77, %v234
    %236 = vdwg.mxu0
    %s237 = scalar_lea.vmem [#allocation2], 10
    %238 = vst [vmem:[%s237] sm:$0x3] %v235
    %s239 = scalar_lea.vmem [#allocation3], 12
    %v240 = vld [vmem:[%s239] sm:$0x3]
    %v242 = vsel %vm79, %v240, 0
    %244 = vmatpush.msra.mxu0 0.0
    %245 = vmatpush.msra.mxu0 0.0
    %246 = vmatpush.msra.mxu0 0.0
    %247 = vmatpush.msra.mxu0 0.0
    %248 = vmatpush.msra.mxu0 0.0
    %249 = vmatpush.msra.mxu0 0.0
    %250 = vmatpush.msra.mxu0 0.0
    %251 = vmatpush.msra.mxu0 0.0
    %252 = vmatpush.msra.mxu0 0.0
    %253 = vmatpush.msra.mxu0 0.0
    %254 = vmatpush.msra.mxu0 0.0
    %255 = vmatpush.msra.mxu0 0.0
    %256 = vmatpush.msra.mxu0 0.0
    %257 = vmatpush.msra.mxu0 0.0
    %258 = vmatpush.msra.mxu0 %v57
    %259 = vmatpush.msra.mxu0 %v56
    %260 = vmatmul.f32.gmra.mxu0 %v242
    %v261 = vpop.f32.mrf.mxu0
    %v262 = vadd.f32 %v77, %v261
    %263 = vdwg.mxu0
    %s264 = scalar_lea.vmem [#allocation2], 12
    %265 = vst [vmem:[%s264] sm:$0x3] %v262
    %s266 = scalar_lea.vmem [#allocation3], 14
    %v267 = vld [vmem:[%s266] sm:$0x3]
    %v269 = vsel %vm79, %v267, 0
    %271 = vmatpush.msra.mxu0 0.0
    %272 = vmatpush.msra.mxu0 0.0
    %273 = vmatpush.msra.mxu0 0.0
    %274 = vmatpush.msra.mxu0 0.0
    %275 = vmatpush.msra.mxu0 0.0
    %276 = vmatpush.msra.mxu0 0.0
    %277 = vmatpush.msra.mxu0 0.0
    %278 = vmatpush.msra.mxu0 0.0
    %279 = vmatpush.msra.mxu0 0.0
    %280 = vmatpush.msra.mxu0 0.0
    %281 = vmatpush.msra.mxu0 0.0
    %282 = vmatpush.msra.mxu0 0.0
    %283 = vmatpush.msra.mxu0 0.0
    %284 = vmatpush.msra.mxu0 0.0
    %285 = vmatpush.msra.mxu0 %v57
    %286 = vmatpush.msra.mxu0 %v56
    %287 = vmatmul.f32.gmra.mxu0 %v269
    %v288 = vpop.f32.mrf.mxu0
    %v289 = vadd.f32 %v77, %v288
    %290 = vdwg.mxu0
    %s291 = scalar_lea.vmem [#allocation2], 14
    %292 = vst [vmem:[%s291] sm:$0x3] %v289
    %v293 = vlaneseq
    %v294 = vand.u32 %v293, 127
    %vm295 = vcmp.ge.s32.totalorder %v294, 64
    %vm296 = vcmp.lt.s32.totalorder %v294, 96
    %vm297 = vmand %vm295, %vm296
    %v298 = vld [vmem:[#allocation2] sm:$0x3]
    %299 = vmatpush.msra.mxu0 %v73
    %300 = vmatpush.msra.mxu0 %v72
    %301 = vmatpush.msra.mxu0 %v71
    %302 = vmatpush.msra.mxu0 %v70
    %303 = vmatpush.msra.mxu0 %v69
    %304 = vmatpush.msra.mxu0 %v68
    %305 = vmatpush.msra.mxu0 %v67
    %306 = vmatpush.msra.mxu0 %v66
    %307 = vmatpush.msra.mxu0 %v65
    %308 = vmatpush.msra.mxu0 %v64
    %309 = vmatpush.msra.mxu0 %v63
    %310 = vmatpush.msra.mxu0 %v62
    %311 = vmatpush.msra.mxu0 %v61
    %312 = vmatpush.msra.mxu0 %v60
    %313 = vmatpush.msra.mxu0 %v59
    %314 = vmatpush.msra.mxu0 %v58
    %315 = vmatmul.f32.gmra.mxu0 0.0
    %v316 = vpop.f32.mrf.mxu0
    %v317 = vadd.f32 0.0, %v316
    %318 = vdwg.mxu0
    %v319 = vadd.f32 %v298, %v317
    %v320 = vxor.u32 %v319, 2147483648
    %v321 = vmul.f32 %v320, 1.442695
    %v322 = vpow.pop %v321
    %v323 = vadd.f32 %v322, 1.0
    %v324 = vrcp.pop %v323
    %v325 = vmul.f32 %v323, %v324
    %v326 = vsub.f32 1.0, %v325
    %v327 = vmul.f32 %v324, %v326
    %v328 = vadd.f32 %v324, %v327
    %vm329 = vweird.f32 %v323
    %vm330 = vweird.f32 %v324
    %vm331 = vmor %vm329, %vm330
    %v332 = vsel %vm331, %v324, %v328
    %v333 = vand.u32 2147483647, %v323
    %vm334 = vcmp.eq.f32.partialorder %v333, 8.507059e+37
    %v335 = vand.u32 %v323, 2147483648
    %v336 = vor.u32 1.1754944e-38, %v335
    %v337 = vsel %vm334, %v336, %v332
    %v338 = vmul.f32 1.0, %v337
    %v339 = vtanh.pop %v319
    %v340 = vsel %vm297, %v339, %v338
    %341 = vrot.lane.b32.xlu0 %v340, 96
    %v342 = vpop.permute.xlu0 %341
    %343 = vrot.lane.b32.xlu0 %v340, 64
    %v344 = vpop.permute.xlu0 %343
    %345 = vrot.lane.b32.xlu0 %v340, 32
    %v346 = vpop.permute.xlu0 %345
    %v347 = vmul.f32 %v342, 0.0
    %v348 = vmul.f32 %v340, %v344
    %v349 = vadd.f32 %v347, %v348
    %v350 = vtanh.pop %v349
    %v351 = vmul.f32 %v346, %v350
    %v352 = vld [vmem:[%s129] sm:$0x3]
    %353 = vmatpush.msra.mxu0 %v73
    %354 = vmatpush.msra.mxu0 %v72
    %355 = vmatpush.msra.mxu0 %v71
    %356 = vmatpush.msra.mxu0 %v70
    %357 = vmatpush.msra.mxu0 %v69
    %358 = vmatpush.msra.mxu0 %v68
    %359 = vmatpush.msra.mxu0 %v67
    %360 = vmatpush.msra.mxu0 %v66
    %361 = vmatpush.msra.mxu0 %v65
    %362 = vmatpush.msra.mxu0 %v64
    %363 = vmatpush.msra.mxu0 %v63
    %364 = vmatpush.msra.mxu0 %v62
    %365 = vmatpush.msra.mxu0 %v61
    %366 = vmatpush.msra.mxu0 %v60
    %367 = vmatpush.msra.mxu0 %v59
    %368 = vmatpush.msra.mxu0 %v58
    %369 = vmatmul.f32.gmra.mxu0 %v351
    %v370 = vpop.f32.mrf.mxu0
    %v371 = vadd.f32 0.0, %v370
    %372 = vdwg.mxu0
    %v373 = vadd.f32 %v352, %v371
    %v374 = vxor.u32 %v373, 2147483648
    %v375 = vmul.f32 %v374, 1.442695
    %v376 = vpow.pop %v375
    %v377 = vadd.f32 %v376, 1.0
    %v378 = vrcp.pop %v377
    %v379 = vmul.f32 %v377, %v378
    %v380 = vsub.f32 1.0, %v379
    %v381 = vmul.f32 %v378, %v380
    %v382 = vadd.f32 %v378, %v381
    %vm383 = vweird.f32 %v377
    %vm384 = vweird.f32 %v378
    %vm385 = vmor %vm383, %vm384
    %v386 = vsel %vm385, %v378, %v382
    %v387 = vand.u32 2147483647, %v377
    %vm388 = vcmp.eq.f32.partialorder %v387, 8.507059e+37
    %v389 = vand.u32 %v377, 2147483648
    %v390 = vor.u32 1.1754944e-38, %v389
    %v391 = vsel %vm388, %v390, %v386
    %v392 = vmul.f32 1.0, %v391
    %v393 = vtanh.pop %v373
    %v394 = vsel %vm297, %v393, %v392
    %395 = vrot.lane.b32.xlu0 %v394, 96
    %v396 = vpop.permute.xlu0 %395
    %397 = vrot.lane.b32.xlu0 %v394, 64
    %v398 = vpop.permute.xlu0 %397
    %399 = vrot.lane.b32.xlu0 %v394, 32
    %v400 = vpop.permute.xlu0 %399
    %v401 = vmul.f32 %v396, %v349
    %v402 = vmul.f32 %v394, %v398
    %v403 = vadd.f32 %v401, %v402
    %v404 = vtanh.pop %v403
    %v405 = vmul.f32 %v400, %v404
    %v406 = vld [vmem:[%s156] sm:$0x3]
    %407 = vmatpush.msra.mxu0 %v73
    %408 = vmatpush.msra.mxu0 %v72
    %409 = vmatpush.msra.mxu0 %v71
    %410 = vmatpush.msra.mxu0 %v70
    %411 = vmatpush.msra.mxu0 %v69
    %412 = vmatpush.msra.mxu0 %v68
    %413 = vmatpush.msra.mxu0 %v67
    %414 = vmatpush.msra.mxu0 %v66
    %415 = vmatpush.msra.mxu0 %v65
    %416 = vmatpush.msra.mxu0 %v64
    %417 = vmatpush.msra.mxu0 %v63
    %418 = vmatpush.msra.mxu0 %v62
    %419 = vmatpush.msra.mxu0 %v61
    %420 = vmatpush.msra.mxu0 %v60
    %421 = vmatpush.msra.mxu0 %v59
    %422 = vmatpush.msra.mxu0 %v58
    %423 = vmatmul.f32.gmra.mxu0 %v405
    %v424 = vpop.f32.mrf.mxu0
    %v425 = vadd.f32 0.0, %v424
    %426 = vdwg.mxu0
    %v427 = vadd.f32 %v406, %v425
    %v428 = vxor.u32 %v427, 2147483648
    %v429 = vmul.f32 %v428, 1.442695
    %v430 = vpow.pop %v429
    %v431 = vadd.f32 %v430, 1.0
    %v432 = vrcp.pop %v431
    %v433 = vmul.f32 %v431, %v432
    %v434 = vsub.f32 1.0, %v433
    %v435 = vmul.f32 %v432, %v434
    %v436 = vadd.f32 %v432, %v435
    %vm437 = vweird.f32 %v431
    %vm438 = vweird.f32 %v432
    %vm439 = vmor %vm437, %vm438
    %v440 = vsel %vm439, %v432, %v436
    %v441 = vand.u32 2147483647, %v431
    %vm442 = vcmp.eq.f32.partialorder %v441, 8.507059e+37
    %v443 = vand.u32 %v431, 2147483648
    %v444 = vor.u32 1.1754944e-38, %v443
    %v445 = vsel %vm442, %v444, %v440
    %v446 = vmul.f32 1.0, %v445
    %v447 = vtanh.pop %v427
    %v448 = vsel %vm297, %v447, %v446
    %449 = vrot.lane.b32.xlu0 %v448, 96
    %v450 = vpop.permute.xlu0 %449
    %451 = vrot.lane.b32.xlu0 %v448, 64
    %v452 = vpop.permute.xlu0 %451
    %453 = vrot.lane.b32.xlu0 %v448, 32
    %v454 = vpop.permute.xlu0 %453
    %v455 = vmul.f32 %v450, %v403
    %v456 = vmul.f32 %v448, %v452
    %v457 = vadd.f32 %v455, %v456
    %v458 = vtanh.pop %v457
    %v459 = vmul.f32 %v454, %v458
    %v460 = vld [vmem:[%s183] sm:$0x3]
    %461 = vmatpush.msra.mxu0 %v73
    %462 = vmatpush.msra.mxu0 %v72
    %463 = vmatpush.msra.mxu0 %v71
    %464 = vmatpush.msra.mxu0 %v70
    %465 = vmatpush.msra.mxu0 %v69
    %466 = vmatpush.msra.mxu0 %v68
    %467 = vmatpush.msra.mxu0 %v67
    %468 = vmatpush.msra.mxu0 %v66
    %469 = vmatpush.msra.mxu0 %v65
    %470 = vmatpush.msra.mxu0 %v64
    %471 = vmatpush.msra.mxu0 %v63
    %472 = vmatpush.msra.mxu0 %v62
    %473 = vmatpush.msra.mxu0 %v61
    %474 = vmatpush.msra.mxu0 %v60
    %475 = vmatpush.msra.mxu0 %v59
    %476 = vmatpush.msra.mxu0 %v58
    %477 = vmatmul.f32.gmra.mxu0 %v459
    %v478 = vpop.f32.mrf.mxu0
    %v479 = vadd.f32 0.0, %v478
    %480 = vdwg.mxu0
    %v481 = vadd.f32 %v460, %v479
    %v482 = vxor.u32 %v481, 2147483648
    %v483 = vmul.f32 %v482, 1.442695
    %v484 = vpow.pop %v483
    %v485 = vadd.f32 %v484, 1.0
    %v486 = vrcp.pop %v485
    %v487 = vmul.f32 %v485, %v486
    %v488 = vsub.f32 1.0, %v487
    %v489 = vmul.f32 %v486, %v488
    %v490 = vadd.f32 %v486, %v489
    %vm491 = vweird.f32 %v485
    %vm492 = vweird.f32 %v486
    %vm493 = vmor %vm491, %vm492
    %v494 = vsel %vm493, %v486, %v490
    %v495 = vand.u32 2147483647, %v485
    %vm496 = vcmp.eq.f32.partialorder %v495, 8.507059e+37
    %v497 = vand.u32 %v485, 2147483648
    %v498 = vor.u32 1.1754944e-38, %v497
    %v499 = vsel %vm496, %v498, %v494
    %v500 = vmul.f32 1.0, %v499
    %v501 = vtanh.pop %v481
    %v502 = vsel %vm297, %v501, %v500
    %503 = vrot.lane.b32.xlu0 %v502, 96
    %v504 = vpop.permute.xlu0 %503
    %505 = vrot.lane.b32.xlu0 %v502, 64
    %v506 = vpop.permute.xlu0 %505
    %507 = vrot.lane.b32.xlu0 %v502, 32
    %v508 = vpop.permute.xlu0 %507
    %v509 = vmul.f32 %v504, %v457
    %v510 = vmul.f32 %v502, %v506
    %v511 = vadd.f32 %v509, %v510
    %v512 = vtanh.pop %v511
    %v513 = vmul.f32 %v508, %v512
    %v514 = vld [vmem:[%s210] sm:$0x3]
    %515 = vmatpush.msra.mxu0 %v73
    %516 = vmatpush.msra.mxu0 %v72
    %517 = vmatpush.msra.mxu0 %v71
    %518 = vmatpush.msra.mxu0 %v70
    %519 = vmatpush.msra.mxu0 %v69
    %520 = vmatpush.msra.mxu0 %v68
    %521 = vmatpush.msra.mxu0 %v67
    %522 = vmatpush.msra.mxu0 %v66
    %523 = vmatpush.msra.mxu0 %v65
    %524 = vmatpush.msra.mxu0 %v64
    %525 = vmatpush.msra.mxu0 %v63
    %526 = vmatpush.msra.mxu0 %v62
    %527 = vmatpush.msra.mxu0 %v61
    %528 = vmatpush.msra.mxu0 %v60
    %529 = vmatpush.msra.mxu0 %v59
    %530 = vmatpush.msra.mxu0 %v58
    %531 = vmatmul.f32.gmra.mxu0 %v513
    %v532 = vpop.f32.mrf.mxu0
    %v533 = vadd.f32 0.0, %v532
    %534 = vdwg.mxu0
    %v535 = vadd.f32 %v514, %v533
    %v536 = vxor.u32 %v535, 2147483648
    %v537 = vmul.f32 %v536, 1.442695
    %v538 = vpow.pop %v537
    %v539 = vadd.f32 %v538, 1.0
    %v540 = vrcp.pop %v539
    %v541 = vmul.f32 %v539, %v540
    %v542 = vsub.f32 1.0, %v541
    %v543 = vmul.f32 %v540, %v542
    %v544 = vadd.f32 %v540, %v543
    %vm545 = vweird.f32 %v539
    %vm546 = vweird.f32 %v540
    %vm547 = vmor %vm545, %vm546
    %v548 = vsel %vm547, %v540, %v544
    %v549 = vand.u32 2147483647, %v539
    %vm550 = vcmp.eq.f32.partialorder %v549, 8.507059e+37
    %v551 = vand.u32 %v539, 2147483648
    %v552 = vor.u32 1.1754944e-38, %v551
    %v553 = vsel %vm550, %v552, %v548
    %v554 = vmul.f32 1.0, %v553
    %v555 = vtanh.pop %v535
    %v556 = vsel %vm297, %v555, %v554
    %557 = vrot.lane.b32.xlu0 %v556, 96
    %v558 = vpop.permute.xlu0 %557
    %559 = vrot.lane.b32.xlu0 %v556, 64
    %v560 = vpop.permute.xlu0 %559
    %561 = vrot.lane.b32.xlu0 %v556, 32
    %v562 = vpop.permute.xlu0 %561
    %v563 = vmul.f32 %v558, %v511
    %v564 = vmul.f32 %v556, %v560
    %v565 = vadd.f32 %v563, %v564
    %v566 = vtanh.pop %v565
    %v567 = vmul.f32 %v562, %v566
    %v568 = vld [vmem:[%s237] sm:$0x3]
    %569 = vmatpush.msra.mxu0 %v73
    %570 = vmatpush.msra.mxu0 %v72
    %571 = vmatpush.msra.mxu0 %v71
    %572 = vmatpush.msra.mxu0 %v70
    %573 = vmatpush.msra.mxu0 %v69
    %574 = vmatpush.msra.mxu0 %v68
    %575 = vmatpush.msra.mxu0 %v67
    %576 = vmatpush.msra.mxu0 %v66
    %577 = vmatpush.msra.mxu0 %v65
    %578 = vmatpush.msra.mxu0 %v64
    %579 = vmatpush.msra.mxu0 %v63
    %580 = vmatpush.msra.mxu0 %v62
    %581 = vmatpush.msra.mxu0 %v61
    %582 = vmatpush.msra.mxu0 %v60
    %583 = vmatpush.msra.mxu0 %v59
    %584 = vmatpush.msra.mxu0 %v58
    %585 = vmatmul.f32.gmra.mxu0 %v567
    %v586 = vpop.f32.mrf.mxu0
    %v587 = vadd.f32 0.0, %v586
    %588 = vdwg.mxu0
    %v589 = vadd.f32 %v568, %v587
    %v590 = vxor.u32 %v589, 2147483648
    %v591 = vmul.f32 %v590, 1.442695
    %v592 = vpow.pop %v591
    %v593 = vadd.f32 %v592, 1.0
    %v594 = vrcp.pop %v593
    %v595 = vmul.f32 %v593, %v594
    %v596 = vsub.f32 1.0, %v595
    %v597 = vmul.f32 %v594, %v596
    %v598 = vadd.f32 %v594, %v597
    %vm599 = vweird.f32 %v593
    %vm600 = vweird.f32 %v594
    %vm601 = vmor %vm599, %vm600
    %v602 = vsel %vm601, %v594, %v598
    %v603 = vand.u32 2147483647, %v593
    %vm604 = vcmp.eq.f32.partialorder %v603, 8.507059e+37
    %v605 = vand.u32 %v593, 2147483648
    %v606 = vor.u32 1.1754944e-38, %v605
    %v607 = vsel %vm604, %v606, %v602
    %v608 = vmul.f32 1.0, %v607
    %v609 = vtanh.pop %v589
    %v610 = vsel %vm297, %v609, %v608
    %611 = vrot.lane.b32.xlu0 %v610, 96
    %v612 = vpop.permute.xlu0 %611
    %613 = vrot.lane.b32.xlu0 %v610, 64
    %v614 = vpop.permute.xlu0 %613
    %615 = vrot.lane.b32.xlu0 %v610, 32
    %v616 = vpop.permute.xlu0 %615
    %v617 = vmul.f32 %v612, %v565
    %v618 = vmul.f32 %v610, %v614
    %v619 = vadd.f32 %v617, %v618
    %v620 = vtanh.pop %v619
    %v621 = vmul.f32 %v616, %v620
    %v622 = vld [vmem:[%s264] sm:$0x3]
    %623 = vmatpush.msra.mxu0 %v73
    %624 = vmatpush.msra.mxu0 %v72
    %625 = vmatpush.msra.mxu0 %v71
    %626 = vmatpush.msra.mxu0 %v70
    %627 = vmatpush.msra.mxu0 %v69
    %628 = vmatpush.msra.mxu0 %v68
    %629 = vmatpush.msra.mxu0 %v67
    %630 = vmatpush.msra.mxu0 %v66
    %631 = vmatpush.msra.mxu0 %v65
    %632 = vmatpush.msra.mxu0 %v64
    %633 = vmatpush.msra.mxu0 %v63
    %634 = vmatpush.msra.mxu0 %v62
    %635 = vmatpush.msra.mxu0 %v61
    %636 = vmatpush.msra.mxu0 %v60
    %637 = vmatpush.msra.mxu0 %v59
    %638 = vmatpush.msra.mxu0 %v58
    %639 = vmatmul.f32.gmra.mxu0 %v621
    %v640 = vpop.f32.mrf.mxu0
    %v641 = vadd.f32 0.0, %v640
    %642 = vdwg.mxu0
    %v643 = vadd.f32 %v622, %v641
    %v644 = vxor.u32 %v643, 2147483648
    %v645 = vmul.f32 %v644, 1.442695
    %v646 = vpow.pop %v645
    %v647 = vadd.f32 %v646, 1.0
    %v648 = vrcp.pop %v647
    %v649 = vmul.f32 %v647, %v648
    %v650 = vsub.f32 1.0, %v649
    %v651 = vmul.f32 %v648, %v650
    %v652 = vadd.f32 %v648, %v651
    %vm653 = vweird.f32 %v647
    %vm654 = vweird.f32 %v648
    %vm655 = vmor %vm653, %vm654
    %v656 = vsel %vm655, %v648, %v652
    %v657 = vand.u32 2147483647, %v647
    %vm658 = vcmp.eq.f32.partialorder %v657, 8.507059e+37
    %v659 = vand.u32 %v647, 2147483648
    %v660 = vor.u32 1.1754944e-38, %v659
    %v661 = vsel %vm658, %v660, %v656
    %v662 = vmul.f32 1.0, %v661
    %v663 = vtanh.pop %v643
    %v664 = vsel %vm297, %v663, %v662
    %665 = vrot.lane.b32.xlu0 %v664, 96
    %v666 = vpop.permute.xlu0 %665
    %667 = vrot.lane.b32.xlu0 %v664, 64
    %v668 = vpop.permute.xlu0 %667
    %669 = vrot.lane.b32.xlu0 %v664, 32
    %v670 = vpop.permute.xlu0 %669
    %v671 = vmul.f32 %v666, %v619
    %v672 = vmul.f32 %v664, %v668
    %v673 = vadd.f32 %v671, %v672
    %v674 = vtanh.pop %v673
    %v675 = vmul.f32 %v670, %v674
    %v676 = vld [vmem:[%s291] sm:$0x3]
    %677 = vmatpush.msra.mxu0 %v73
    %678 = vmatpush.msra.mxu0 %v72
    %679 = vmatpush.msra.mxu0 %v71
    %680 = vmatpush.msra.mxu0 %v70
    %681 = vmatpush.msra.mxu0 %v69
    %682 = vmatpush.msra.mxu0 %v68
    %683 = vmatpush.msra.mxu0 %v67
    %684 = vmatpush.msra.mxu0 %v66
    %685 = vmatpush.msra.mxu0 %v65
    %686 = vmatpush.msra.mxu0 %v64
    %687 = vmatpush.msra.mxu0 %v63
    %688 = vmatpush.msra.mxu0 %v62
    %689 = vmatpush.msra.mxu0 %v61
    %690 = vmatpush.msra.mxu0 %v60
    %691 = vmatpush.msra.mxu0 %v59
    %692 = vmatpush.msra.mxu0 %v58
    %693 = vmatmul.f32.gmra.mxu0 %v675
    %v694 = vpop.f32.mrf.mxu0
    %v695 = vadd.f32 0.0, %v694
    %696 = vdwg.mxu0
    %v697 = vadd.f32 %v676, %v695
    %v698 = vxor.u32 %v697, 2147483648
    %v699 = vmul.f32 %v698, 1.442695
    %v700 = vpow.pop %v699
    %v701 = vadd.f32 %v700, 1.0
    %v702 = vrcp.pop %v701
    %v703 = vmul.f32 %v701, %v702
    %v704 = vsub.f32 1.0, %v703
    %v705 = vmul.f32 %v702, %v704
    %v706 = vadd.f32 %v702, %v705
    %vm707 = vweird.f32 %v701
    %vm708 = vweird.f32 %v702
    %vm709 = vmor %vm707, %vm708
    %v710 = vsel %vm709, %v702, %v706
    %v711 = vand.u32 2147483647, %v701
    %vm712 = vcmp.eq.f32.partialorder %v711, 8.507059e+37
    %v713 = vand.u32 %v701, 2147483648
    %v714 = vor.u32 1.1754944e-38, %v713
    %v715 = vsel %vm712, %v714, %v710
    %v716 = vmul.f32 1.0, %v715
    %v717 = vtanh.pop %v697
    %v718 = vsel %vm297, %v717, %v716
    %719 = vrot.lane.b32.xlu0 %v718, 96
    %v720 = vpop.permute.xlu0 %719
    %721 = vrot.lane.b32.xlu0 %v718, 64
    %v722 = vpop.permute.xlu0 %721
    %723 = vrot.lane.b32.xlu0 %v718, 32
    %v724 = vpop.permute.xlu0 %723
    %v725 = vmul.f32 %v720, %v673
    %v726 = vmul.f32 %v718, %v722
    %v727 = vadd.f32 %v725, %v726
    %v728 = vtanh.pop %v727
    %v729 = vmul.f32 %v724, %v728
    %v730 = vld [vmem:[%s4] sm:$0xff]
    %v731 = vld [vmem:[%s4 + $0x8] sm:$0xff]
    %v732 = vld [vmem:[%s4 + $0x10] sm:$0xff]
    %v733 = vld [vmem:[%s4 + $0x18] sm:$0xff]
    %v734 = vld [vmem:[%s4 + $0x20] sm:$0xff]
    %v735 = vld [vmem:[%s4 + $0x28] sm:$0xff]
    %v736 = vld [vmem:[%s4 + $0x30] sm:$0xff]
    %v737 = vld [vmem:[%s4 + $0x38] sm:$0xff]
    %v738 = vld [vmem:[%s4 + $0x40] sm:$0xff]
    %v739 = vld [vmem:[%s4 + $0x48] sm:$0xff]
    %v740 = vld [vmem:[%s4 + $0x50] sm:$0xff]
    %v741 = vld [vmem:[%s4 + $0x58] sm:$0xff]
    %v742 = vld [vmem:[%s4 + $0x60] sm:$0xff]
    %v743 = vld [vmem:[%s4 + $0x68] sm:$0xff]
    %v744 = vld [vmem:[%s4 + $0x70] sm:$0xff]
    %v745 = vld [vmem:[%s4 + $0x78] sm:$0xff]
    %v746 = vld [vmem:[%s5] sm:$0x1]
    %v748 = vperm.slane %v746, 0
    %750 = vmatpush.msra.mxu0 %v745
    %751 = vmatpush.msra.mxu0 %v744
    %752 = vmatpush.msra.mxu0 %v743
    %753 = vmatpush.msra.mxu0 %v742
    %754 = vmatpush.msra.mxu0 %v741
    %755 = vmatpush.msra.mxu0 %v740
    %756 = vmatpush.msra.mxu0 %v739
    %757 = vmatpush.msra.mxu0 %v738
    %758 = vmatpush.msra.mxu0 %v737
    %759 = vmatpush.msra.mxu0 %v736
    %760 = vmatpush.msra.mxu0 %v735
    %761 = vmatpush.msra.mxu0 %v734
    %762 = vmatpush.msra.mxu0 %v733
    %763 = vmatpush.msra.mxu0 %v732
    %764 = vmatpush.msra.mxu0 %v731
    %765 = vmatpush.msra.mxu0 %v730
    %766 = vmatmul.f32.gmra.mxu0 %v729
    %v767 = vpop.f32.mrf.mxu0
    %v768 = vadd.f32 %v748, %v767
    %769 = vdwg.mxu0
    %vm770 = vcmask 9216
    %771 = vst.msk [vmem:[#allocation8] sm:$0x3] %vm770, %v768
    // Predicated region
    $region34: #{tpu_custom_call.1} parent=1 // pred_check
      _
    $region35: #{tpu_custom_call.1} parent=1 // pred_check_branch
      %773 = sbr.rel (0) target = $region37
    $region36: #{tpu_custom_call.1} parent=1 // pred_region
      %775 = vsyncadd [#allocation5], 0
      %s777 = sshll.u32 [#allocation8], 4
      %s778 = int_to_ptr.vmem [resolvable:$true] %s777
      %s779 = sshll.u32 %s6, 4
      %s780 = int_to_ptr.hbm [resolvable:$true] %s779
      %782 = dma.vmem_to_hbm [thread:$0]  %s778, 32, %s780, [#allocation5]
    $region37: #{tpu_custom_call.1} parent=1 // pred_fallthru
      _
    // Predicated region
    $region38: #{tpu_custom_call.1} parent=1 // pred_check
      _
    $region39: #{tpu_custom_call.1} parent=1 // pred_check_branch
      %784 = sbr.rel (0) target = $region41
    $region40: #{tpu_custom_call.1} parent=1 // pred_region
      %786 = dma.done [#allocation5], 32
    $region41: #{tpu_custom_call.1} parent=1 // pred_fallthru
      _
    %787 = vsyncpa [#allocation4], 1
    %788 = vsyncpa [#allocation7], 1
    %789 = vsyncpa [#allocation5], 1

</llo_original>
